<compile_context>
chip_gen: v5e
topology: v5e:2x2
jax: 0.10.0
libtpu: 0.0.40
codegen_flags: <defaults>
</compile_context>

<pallas_src>
import jax
import jax.numpy as jnp
from jax.experimental import pallas as pl
from jax.experimental.pallas import tpu as pltpu

# ---- model hyper-parameters (small, but consistent with the module) --------
HALF_IN_SIZE = 256      # half_in_size (original: round(num_ftrs / 2))
LAYER_WIDTH = 128       # layer_width  (original: 1024)
NUM_CLASS = 10          # Num_class
OUT_PAD = 128           # lane-dense padded output width
BATCH = 8
BN_EPS = 1e-5

# Row offsets inside the packed weight slab [2H + 4L, 2L] = [1024, 256].
_R_WA = 0
_R_WB = HALF_IN_SIZE
_R_C1 = 2 * HALF_IN_SIZE
_R_C2 = _R_C1 + LAYER_WIDTH
_R_C3 = _R_C2 + LAYER_WIDTH
_R_C4 = _R_C3 + LAYER_WIDTH
_W_ROWS = _R_C4 + LAYER_WIDTH          # 1024
_W_COLS = 2 * LAYER_WIDTH              # 256


def _round_up(x, m):
    return ((x + m - 1) // m) * m


def spinalnet_kernel(x_ref, w_ref, tb_ref, o_ref):
    H, L = HALF_IN_SIZE, LAYER_WIDTH

    # Input halves as ref views (zero-cost slicing, lane-aligned).
    xa = x_ref[:, :H]                                  # [bm, H] bf16
    xb = x_ref[:, H:]                                  # [bm, H] bf16

    # Static carves of the packed weight slab (ref views).
    wa = w_ref[_R_WA:_R_WA + H, :]                     # [H, 2L]  -> [z1 | z3a]
    wb = w_ref[_R_WB:_R_WB + H, :]                     # [H, 2L]  -> [z2a | z4a]
    c1 = w_ref[_R_C1:_R_C1 + L, :]                     # [L, 2L]  = [w2b | wo1]
    c2 = w_ref[_R_C2:_R_C2 + L, :]                     # [L, 2L]  = [w3b | wo2]
    c3 = w_ref[_R_C3:_R_C3 + L, :]                     # [L, 2L]  = [w4b | wo3]
    c4 = w_ref[_R_C4:_R_C4 + L, L:]                    # [L, L]   =        wo4

    # Folded bias+BN shifts and fc_out bias (single [8,128] f32 tile).
    t1 = tb_ref[0:1, :]
    t2 = tb_ref[1:2, :]
    t3 = tb_ref[2:3, :]
    t4 = tb_ref[3:4, :]
    bo = tb_ref[4:5, :]

    # Two wide MXU passes cover all data-independent half-input matmuls.
    za = jnp.dot(xa, wa, preferred_element_type=jnp.float32)   # [bm, 2L]
    zb = jnp.dot(xb, wb, preferred_element_type=jnp.float32)   # [bm, 2L]

    # Dependent spinal chain: each 256-wide pass also produces its fc_out
    # contribution (cols L:) as a free by-product of the critical-path matmul.
    x1 = jnp.maximum(za[:, :L] + t1, 0.0).astype(jnp.bfloat16)
    d1 = jnp.dot(x1, c1, preferred_element_type=jnp.float32)   # [x1@w2b | x1@wo1]
    x2 = jnp.maximum(zb[:, :L] + d1[:, :L] + t2, 0.0).astype(jnp.bfloat16)
    d2 = jnp.dot(x2, c2, preferred_element_type=jnp.float32)   # [x2@w3b | x2@wo2]
    x3 = jnp.maximum(za[:, L:] + d2[:, :L] + t3, 0.0).astype(jnp.bfloat16)
    d3 = jnp.dot(x3, c3, preferred_element_type=jnp.float32)   # [x3@w4b | x3@wo3]
    x4 = jnp.maximum(zb[:, L:] + d3[:, :L] + t4, 0.0).astype(jnp.bfloat16)
    d4 = jnp.dot(x4, c4, preferred_element_type=jnp.float32)   #  x4@wo4

    # fc_out: cat([x1..x4]) @ Wo + bo  ==  sum of row-block matmuls (no concat).
    out = d1[:, L:] + d2[:, L:] + d3[:, L:] + d4 + bo
    o_ref[...] = out.astype(o_ref.dtype)               # lane-dense [bm,128] bf16


def spinalnet_forward(x, packed, *, block_m=512):
    """x: [B, 2*HALF_IN_SIZE] float32. Returns [B, NUM_CLASS] float32."""
    B = x.shape[0]
    if B >= 32:
        # >= 2 grid steps so the "parallel" batch axis feeds both v7x cores,
        # while still using big tiles to amortize per-step overhead.
        bm = min(block_m, _round_up((B + 1) // 2, 16))
    else:
        bm = _round_up(B, 16)                    # full [16,128] bf16 vregs
    b_pad = _round_up(B, bm)
    if b_pad != B:
        x = jnp.pad(x, ((0, b_pad - B), (0, 0)))
    x = x.astype(jnp.bfloat16)

    w_slab = packed["w"]                         # [1024, 256] bf16
    tb = packed["tb"]                            # [8, 128]   f32

    out = pl.pallas_call(
        spinalnet_kernel,
        out_shape=jax.ShapeDtypeStruct((b_pad, OUT_PAD), jnp.bfloat16),
        grid=(b_pad // bm,),
        in_specs=[
            pl.BlockSpec((bm, 2 * HALF_IN_SIZE), lambda i: (i, 0)),
            pl.BlockSpec((_W_ROWS, _W_COLS), lambda i: (0, 0)),   # resident
            pl.BlockSpec((8, 128), lambda i: (0, 0)),             # resident
        ],
        out_specs=pl.BlockSpec((bm, OUT_PAD), lambda i: (i, 0)),
        compiler_params=pltpu.CompilerParams(
            dimension_semantics=("parallel",)),   # shards batch across TCs
    )(x, w_slab, tb)
    # Padded rows contain relu(t') garbage by construction -> must slice [:B].
    return out[:B, :NUM_CLASS].astype(jnp.float32)


def make_params(key):
    """Raw (torch-equivalent) parameters: Linear W [in,out] + b, BN stats."""
    ks = jax.random.split(key, 9)
    f32 = jnp.float32
    H, L, C = HALF_IN_SIZE, LAYER_WIDTH, NUM_CLASS

    def lin(k, fan_in, fan_out):
        kw, kb = jax.random.split(k)
        w = 0.02 * jax.random.normal(kw, (fan_in, fan_out), dtype=f32)
        b = 0.02 * jax.random.normal(kb, (1, fan_out), dtype=f32)
        return w, b

    def bn(k, width):
        kg, kb, km, kv = jax.random.split(k, 4)
        gamma = 1.0 + 0.1 * jax.random.normal(kg, (1, width), dtype=f32)
        beta = 0.1 * jax.random.normal(kb, (1, width), dtype=f32)
        mean = 0.1 * jax.random.normal(km, (1, width), dtype=f32)
        var = jnp.abs(1.0 + 0.1 * jax.random.normal(kv, (1, width), dtype=f32))
        return gamma, beta, mean, var

    p = {}
    p["w1"], p["b1"] = lin(ks[0], H, L)
    p["w2"], p["b2"] = lin(ks[1], H + L, L)
    p["w3"], p["b3"] = lin(ks[2], H + L, L)
    p["w4"], p["b4"] = lin(ks[3], H + L, L)
    p["wo"], p["bo"] = lin(ks[4], 4 * L, C)
    for i in (1, 2, 3, 4):
        p[f"g{i}"], p[f"be{i}"], p[f"m{i}"], p[f"v{i}"] = bn(ks[4 + i], L)
    return p


def pack_params(p):
    """Fold BN + bias, fuse/split/pack weights into two kernel operands."""
    H, L, C = HALF_IN_SIZE, LAYER_WIDTH, NUM_CLASS
    bf16 = jnp.bfloat16

    def fold(w, b, g, beta, m, v):
        s = g / jnp.sqrt(v + BN_EPS)          # [1, L]  BN scale
        w_f = w * s                           # scale output columns
        t_f = b * s + (beta - m * s)          # bias folded into BN shift
        return w_f, t_f

    w1f, t1 = fold(p["w1"], p["b1"], p["g1"], p["be1"], p["m1"], p["v1"])
    w2f, t2 = fold(p["w2"], p["b2"], p["g2"], p["be2"], p["m2"], p["v2"])
    w3f, t3 = fold(p["w3"], p["b3"], p["g3"], p["be3"], p["m3"], p["v3"])
    w4f, t4 = fold(p["w4"], p["b4"], p["g4"], p["be4"], p["m4"], p["v4"])

    # Layers 2-4 act on cat([x_half, x_prev]); split weight rows accordingly.
    w2a, w2b = w2f[:H], w2f[H:]
    w3a, w3b = w3f[:H], w3f[H:]
    w4a, w4b = w4f[:H], w4f[H:]

    # Fuse the data-independent half-input matmuls into two wide passes.
    wa = jnp.concatenate([w1f, w3a], axis=1)   # xa @ wa -> [z1 | z3a]
    wb = jnp.concatenate([w2a, w4a], axis=1)   # xb @ wb -> [z2a | z4a]

    # fc_out: zero-pad to lane-dense 128 outputs, split rows per spinal output.
    wo = jnp.pad(p["wo"], ((0, 0), (0, OUT_PAD - C)))
    bo = jnp.pad(p["bo"], ((0, 0), (0, OUT_PAD - C)))
    wo1, wo2, wo3, wo4 = wo[:L], wo[L:2 * L], wo[2 * L:3 * L], wo[3 * L:]

    # Fuse chain weights with fc_out row blocks -> 256-wide MXU passes.
    c1 = jnp.concatenate([w2b, wo1], axis=1)                     # [L, 2L]
    c2 = jnp.concatenate([w3b, wo2], axis=1)                     # [L, 2L]
    c3 = jnp.concatenate([w4b, wo3], axis=1)                     # [L, 2L]
    c4 = jnp.concatenate([jnp.zeros((L, L), jnp.float32), wo4], axis=1)

    # Single packed weight slab (one DMA, carved with static ref views).
    w_slab = jnp.concatenate([wa, wb, c1, c2, c3, c4], axis=0).astype(bf16)
    assert w_slab.shape == (_W_ROWS, _W_COLS)

    # Single [8,128] f32 tile: rows 0-3 = folded shifts, row 4 = fc_out bias.
    tb = jnp.concatenate(
        [t1, t2, t3, t4, bo, jnp.zeros((3, OUT_PAD), jnp.float32)], axis=0)

    return {"w": w_slab, "tb": tb}


def reference_forward(x, p):
    """Pure-JAX f32 reference with the ORIGINAL (un-folded) eval-mode params."""
    H = HALF_IN_SIZE
    xa, xb = x[:, :H], x[:, H:]

    def layer(inp, w, b, g, beta, m, v):
        z = inp @ w + b
        z = (z - m) / jnp.sqrt(v + BN_EPS) * g + beta
        return jnp.maximum(z, 0.0)

    x1 = layer(xa, p["w1"], p["b1"], p["g1"], p["be1"], p["m1"], p["v1"])
    x2 = layer(jnp.concatenate([xb, x1], axis=1),
               p["w2"], p["b2"], p["g2"], p["be2"], p["m2"], p["v2"])
    x3 = layer(jnp.concatenate([xa, x2], axis=1),
               p["w3"], p["b3"], p["g3"], p["be3"], p["m3"], p["v3"])
    x4 = layer(jnp.concatenate([xb, x3], axis=1),
               p["w4"], p["b4"], p["g4"], p["be4"], p["m4"], p["v4"])
    h = jnp.concatenate([x1, x2, x3, x4], axis=1)
    return h @ p["wo"] + p["bo"]


if __name__ == "__main__":
    # TODO(synk): training loop (Dropout RNG, CrossEntropyLoss, SGD) is out of
    # scope; this kernel implements the eval-mode forward pass only.
    key = jax.random.PRNGKey(0)
    kx, kp = jax.random.split(key)
    x = jax.random.normal(kx, (BATCH, 2 * HALF_IN_SIZE), dtype=jnp.float32)

    raw = make_params(kp)
    packed = pack_params(raw)

    out = spinalnet_forward(x, packed)
    out = jax.block_until_ready(out)

    ref = reference_forward(x, raw)
    assert out.shape == (BATCH, NUM_CLASS)
    # bf16 weights/activations/output with f32 accumulation -> loose tolerances.
    assert jnp.allclose(out, ref, atol=5e-2, rtol=5e-2)

    print("KERNEL_OK")
</pallas_src>

<mosaic_0001>
module attributes {stable_mosaic.version = 11 : i64} {
  func.func @spinalnet_kernel(%arg0: i32, %arg1: memref<16x512xbf16, #tpu.memory_space<vmem>>, %arg2: memref<1024x256xbf16, #tpu.memory_space<vmem>>, %arg3: memref<8x128xf32, #tpu.memory_space<vmem>>, %arg4: memref<16x128xbf16, #tpu.memory_space<vmem>>) attributes {dimension_semantics = [#tpu.dimension_semantics<parallel>], iteration_bounds = array<i64: 1>, scalar_prefetch = 0 : i64, scratch_operands = 0 : i64, tpu.core_type = #tpu.core_type<tc>, window_params = [{transform_indices = @transform_0, window_bounds = array<i64: 16, 512>}, {pipeline_mode = #tpu.pipeline_mode<synchronous>, transform_indices = @transform_1, window_bounds = array<i64: 1024, 256>}, {pipeline_mode = #tpu.pipeline_mode<synchronous>, transform_indices = @transform_2, window_bounds = array<i64: 8, 128>}, {transform_indices = @transform_3, window_bounds = array<i64: 16, 128>}]} {
    %c0 = arith.constant 0 : index
    %c0_0 = arith.constant 0 : index
    %0 = vector.load %arg1[%c0, %c0_0] : memref<16x512xbf16, #tpu.memory_space<vmem>>, vector<16x256xbf16>
    %c0_1 = arith.constant 0 : index
    %c256 = arith.constant 256 : index
    %1 = vector.load %arg1[%c0_1, %c256] : memref<16x512xbf16, #tpu.memory_space<vmem>>, vector<16x256xbf16>
    %c0_2 = arith.constant 0 : index
    %c0_3 = arith.constant 0 : index
    %2 = vector.load %arg2[%c0_2, %c0_3] : memref<1024x256xbf16, #tpu.memory_space<vmem>>, vector<256x256xbf16>
    %c256_4 = arith.constant 256 : index
    %c0_5 = arith.constant 0 : index
    %3 = vector.load %arg2[%c256_4, %c0_5] : memref<1024x256xbf16, #tpu.memory_space<vmem>>, vector<256x256xbf16>
    %c512 = arith.constant 512 : index
    %c0_6 = arith.constant 0 : index
    %4 = vector.load %arg2[%c512, %c0_6] : memref<1024x256xbf16, #tpu.memory_space<vmem>>, vector<128x256xbf16>
    %c640 = arith.constant 640 : index
    %c0_7 = arith.constant 0 : index
    %5 = vector.load %arg2[%c640, %c0_7] : memref<1024x256xbf16, #tpu.memory_space<vmem>>, vector<128x256xbf16>
    %c768 = arith.constant 768 : index
    %c0_8 = arith.constant 0 : index
    %6 = vector.load %arg2[%c768, %c0_8] : memref<1024x256xbf16, #tpu.memory_space<vmem>>, vector<128x256xbf16>
    %c896 = arith.constant 896 : index
    %c128 = arith.constant 128 : index
    %7 = vector.load %arg2[%c896, %c128] : memref<1024x256xbf16, #tpu.memory_space<vmem>>, vector<128x128xbf16>
    %c0_9 = arith.constant 0 : index
    %c0_10 = arith.constant 0 : index
    %8 = vector.load %arg3[%c0_9, %c0_10] : memref<8x128xf32, #tpu.memory_space<vmem>>, vector<1x128xf32>
    %c1 = arith.constant 1 : index
    %c0_11 = arith.constant 0 : index
    %9 = vector.load %arg3[%c1, %c0_11] : memref<8x128xf32, #tpu.memory_space<vmem>>, vector<1x128xf32>
    %c2 = arith.constant 2 : index
    %c0_12 = arith.constant 0 : index
    %10 = vector.load %arg3[%c2, %c0_12] : memref<8x128xf32, #tpu.memory_space<vmem>>, vector<1x128xf32>
    %c3 = arith.constant 3 : index
    %c0_13 = arith.constant 0 : index
    %11 = vector.load %arg3[%c3, %c0_13] : memref<8x128xf32, #tpu.memory_space<vmem>>, vector<1x128xf32>
    %c4 = arith.constant 4 : index
    %c0_14 = arith.constant 0 : index
    %12 = vector.load %arg3[%c4, %c0_14] : memref<8x128xf32, #tpu.memory_space<vmem>>, vector<1x128xf32>
    %cst = arith.constant dense<0.000000e+00> : vector<16x256xf32>
    %13 = tpu.matmul %0, %2, %cst {dimension_numbers = #tpu.dot_dimension_numbers<[1], [0], [0], [1], [0, 0, 1, 1], [], []>} : vector<16x256xbf16>, vector<256x256xbf16>, vector<16x256xf32> -> vector<16x256xf32>
    %cst_15 = arith.constant dense<0.000000e+00> : vector<16x256xf32>
    %14 = tpu.matmul %1, %3, %cst_15 {dimension_numbers = #tpu.dot_dimension_numbers<[1], [0], [0], [1], [0, 0, 1, 1], [], []>} : vector<16x256xbf16>, vector<256x256xbf16>, vector<16x256xf32> -> vector<16x256xf32>
    %15 = vector.extract_strided_slice %13 {offsets = [0, 0], sizes = [16, 128], strides = [1, 1]} : vector<16x256xf32> to vector<16x128xf32>
    %16 = vector.broadcast %8 : vector<1x128xf32> to vector<16x128xf32>
    %17 = arith.addf %15, %16 : vector<16x128xf32>
    %cst_16 = arith.constant 0.000000e+00 : f32
    %18 = vector.broadcast %cst_16 : f32 to vector<16x128xf32>
    %19 = arith.maximumf %17, %18 : vector<16x128xf32>
    %20 = arith.truncf %19 : vector<16x128xf32> to vector<16x128xbf16>
    %cst_17 = arith.constant dense<0.000000e+00> : vector<16x256xf32>
    %21 = tpu.matmul %20, %4, %cst_17 {dimension_numbers = #tpu.dot_dimension_numbers<[1], [0], [0], [1], [0, 0, 1, 1], [], []>} : vector<16x128xbf16>, vector<128x256xbf16>, vector<16x256xf32> -> vector<16x256xf32>
    %22 = vector.extract_strided_slice %14 {offsets = [0, 0], sizes = [16, 128], strides = [1, 1]} : vector<16x256xf32> to vector<16x128xf32>
    %23 = vector.extract_strided_slice %21 {offsets = [0, 0], sizes = [16, 128], strides = [1, 1]} : vector<16x256xf32> to vector<16x128xf32>
    %24 = arith.addf %22, %23 : vector<16x128xf32>
    %25 = vector.broadcast %9 : vector<1x128xf32> to vector<16x128xf32>
    %26 = arith.addf %24, %25 : vector<16x128xf32>
    %cst_18 = arith.constant 0.000000e+00 : f32
    %27 = vector.broadcast %cst_18 : f32 to vector<16x128xf32>
    %28 = arith.maximumf %26, %27 : vector<16x128xf32>
    %29 = arith.truncf %28 : vector<16x128xf32> to vector<16x128xbf16>
    %cst_19 = arith.constant dense<0.000000e+00> : vector<16x256xf32>
    %30 = tpu.matmul %29, %5, %cst_19 {dimension_numbers = #tpu.dot_dimension_numbers<[1], [0], [0], [1], [0, 0, 1, 1], [], []>} : vector<16x128xbf16>, vector<128x256xbf16>, vector<16x256xf32> -> vector<16x256xf32>
    %31 = vector.extract_strided_slice %13 {offsets = [0, 128], sizes = [16, 128], strides = [1, 1]} : vector<16x256xf32> to vector<16x128xf32>
    %32 = vector.extract_strided_slice %30 {offsets = [0, 0], sizes = [16, 128], strides = [1, 1]} : vector<16x256xf32> to vector<16x128xf32>
    %33 = arith.addf %31, %32 : vector<16x128xf32>
    %34 = vector.broadcast %10 : vector<1x128xf32> to vector<16x128xf32>
    %35 = arith.addf %33, %34 : vector<16x128xf32>
    %cst_20 = arith.constant 0.000000e+00 : f32
    %36 = vector.broadcast %cst_20 : f32 to vector<16x128xf32>
    %37 = arith.maximumf %35, %36 : vector<16x128xf32>
    %38 = arith.truncf %37 : vector<16x128xf32> to vector<16x128xbf16>
    %cst_21 = arith.constant dense<0.000000e+00> : vector<16x256xf32>
    %39 = tpu.matmul %38, %6, %cst_21 {dimension_numbers = #tpu.dot_dimension_numbers<[1], [0], [0], [1], [0, 0, 1, 1], [], []>} : vector<16x128xbf16>, vector<128x256xbf16>, vector<16x256xf32> -> vector<16x256xf32>
    %40 = vector.extract_strided_slice %14 {offsets = [0, 128], sizes = [16, 128], strides = [1, 1]} : vector<16x256xf32> to vector<16x128xf32>
    %41 = vector.extract_strided_slice %39 {offsets = [0, 0], sizes = [16, 128], strides = [1, 1]} : vector<16x256xf32> to vector<16x128xf32>
    %42 = arith.addf %40, %41 : vector<16x128xf32>
    %43 = vector.broadcast %11 : vector<1x128xf32> to vector<16x128xf32>
    %44 = arith.addf %42, %43 : vector<16x128xf32>
    %cst_22 = arith.constant 0.000000e+00 : f32
    %45 = vector.broadcast %cst_22 : f32 to vector<16x128xf32>
    %46 = arith.maximumf %44, %45 : vector<16x128xf32>
    %47 = arith.truncf %46 : vector<16x128xf32> to vector<16x128xbf16>
    %cst_23 = arith.constant dense<0.000000e+00> : vector<16x128xf32>
    %48 = tpu.matmul %47, %7, %cst_23 {dimension_numbers = #tpu.dot_dimension_numbers<[1], [0], [0], [1], [0, 0, 1, 1], [], []>} : vector<16x128xbf16>, vector<128x128xbf16>, vector<16x128xf32> -> vector<16x128xf32>
    %49 = vector.extract_strided_slice %21 {offsets = [0, 128], sizes = [16, 128], strides = [1, 1]} : vector<16x256xf32> to vector<16x128xf32>
    %50 = vector.extract_strided_slice %30 {offsets = [0, 128], sizes = [16, 128], strides = [1, 1]} : vector<16x256xf32> to vector<16x128xf32>
    %51 = arith.addf %49, %50 : vector<16x128xf32>
    %52 = vector.extract_strided_slice %39 {offsets = [0, 128], sizes = [16, 128], strides = [1, 1]} : vector<16x256xf32> to vector<16x128xf32>
    %53 = arith.addf %51, %52 : vector<16x128xf32>
    %54 = arith.addf %53, %48 : vector<16x128xf32>
    %55 = vector.broadcast %12 : vector<1x128xf32> to vector<16x128xf32>
    %56 = arith.addf %54, %55 : vector<16x128xf32>
    %57 = arith.truncf %56 : vector<16x128xf32> to vector<16x128xbf16>
    %c0_24 = arith.constant 0 : index
    %c0_25 = arith.constant 0 : index
    %58 = vector.load %arg4[%c0_24, %c0_25] : memref<16x128xbf16, #tpu.memory_space<vmem>>, vector<16x128xbf16>
    tpu.vector_store %arg4[%c0_24, %c0_25], %57 {strides = array<i32>} : memref<16x128xbf16, #tpu.memory_space<vmem>>, vector<16x128xbf16>,
    return
  }
  func.func @transform_0(%arg0: i32) -> (i32, i32) {
    %c0_i32 = arith.constant 0 : i32
    %c0_i32_0 = arith.constant 0 : i32
    return %arg0, %c0_i32 : i32, i32
  }
  func.func @transform_1(%arg0: i32) -> (i32, i32) {
    %c0_i32 = arith.constant 0 : i32
    %c0_i32_0 = arith.constant 0 : i32
    %c0_i32_1 = arith.constant 0 : i32
    return %c0_i32, %c0_i32_0 : i32, i32
  }
  func.func @transform_2(%arg0: i32) -> (i32, i32) {
    %c0_i32 = arith.constant 0 : i32
    %c0_i32_0 = arith.constant 0 : i32
    %c0_i32_1 = arith.constant 0 : i32
    return %c0_i32, %c0_i32_0 : i32, i32
  }
  func.func @transform_3(%arg0: i32) -> (i32, i32) {
    %c0_i32 = arith.constant 0 : i32
    %c0_i32_0 = arith.constant 0 : i32
    return %arg0, %c0_i32 : i32, i32
  }
}

</mosaic_0001>

<llo_original>
// kernel: tpu_custom_call.1
$region0: #{tpu_custom_call.1}
  #allocation0 [shape = 'u32[]', space=smem, size = 0x4, offset = 0x4, fixed_abs, tag = 'smem constant byte address 0x4 - core index']
  #allocation1 [shape = 'u32[72,128]{1,0:T(1,128)}', space=vmem, size = 0x9000, scoped, tag = 'internal scratch']
  %s0 = inlined_call_operand.hbm [shape: bf16[16,512], index: 0, kind: input, shape index: {}]
  %s1 = inlined_call_operand.hbm [shape: bf16[1024,256], index: 1, kind: input, shape index: {}]
  %s2 = inlined_call_operand.hbm [shape: f32[8,128], index: 2, kind: input, shape index: {}]
  %s3 = inlined_call_operand.hbm [shape: bf16[16,128], index: 3, kind: output, shape index: {}]
  %s4 = sld [smem:[#allocation0]]
  $region34: #{tpu_custom_call.1} parent=0
    _
  %s6 = ssub.s32 1, %s4
  %s7 = scalar_select 0, %s6, %s4
  $region1: #{tpu_custom_call.1} parent=0
    #allocation2 [shape = 'u8[16384]{0}', space=vmem, size = 0x4000, scoped, tag = 'input window, operand 0, single buffered']
    #allocation3 [shape = 's32[1]{0}', space=sflag, size = 0x4, scoped, tag = 'scoped memory for tpu_custom_call.1']
    #allocation4 [shape = 's32[1]{0}', space=sflag, size = 0x4, scoped, tag = 'scoped memory for tpu_custom_call.1']
    #allocation5 [shape = 'u8[524288]{0}', space=vmem, size = 0x80000, scoped, tag = 'input window, operand 1, single buffered']
    #allocation6 [shape = 's32[1]{0}', space=sflag, size = 0x4, scoped, tag = 'scoped memory for tpu_custom_call.1']
    #allocation7 [shape = 'u8[4096]{0}', space=vmem, size = 0x1000, scoped, tag = 'input window, operand 2, single buffered']
    #allocation8 [shape = 'u8[4096]{0}', space=vmem, size = 0x1000, scoped, tag = 'output window, operand 0, single buffered']
    %8 = vsyncpa [#allocation3], 0
    %9 = vsyncpa [#allocation6], 0
    %10 = vsyncpa [#allocation4], 0
    // Predicated region
    $region2: #{tpu_custom_call.1} parent=1 // pred_check
      _
    $region3: #{tpu_custom_call.1} parent=1 // pred_check_branch
      %12 = sbr.rel (0) target = $region5
    $region4: #{tpu_custom_call.1} parent=1 // pred_region
      %14 = vsyncadd [#allocation3], 0
      %s15 = sshll.u32 %s0, 4
      %s16 = int_to_ptr.hbm [resolvable:$true] %s15
      %s17 = sshll.u32 [#allocation2], 4
      %s18 = int_to_ptr.vmem [resolvable:$true] %s17
      %23 = dma.hbm_to_vmem [thread:$0]  %s16, 512, %s18, [#allocation3], 256, 256, 16
    $region5: #{tpu_custom_call.1} parent=1 // pred_fallthru
      _
    // Predicated region
    $region6: #{tpu_custom_call.1} parent=1 // pred_check
      _
    $region7: #{tpu_custom_call.1} parent=1 // pred_check_branch
      %25 = sbr.rel (0) target = $region9
    $region8: #{tpu_custom_call.1} parent=1 // pred_region
      %27 = vsyncadd [#allocation6], 0
      %s28 = sshll.u32 %s1, 4
      %s29 = int_to_ptr.hbm [resolvable:$true] %s28
      %s30 = sshll.u32 [#allocation5], 4
      %s31 = int_to_ptr.vmem [resolvable:$true] %s30
      %36 = dma.hbm_to_vmem [thread:$0]  %s29, 16384, %s31, [#allocation6], 128, 128, 8
    $region9: #{tpu_custom_call.1} parent=1 // pred_fallthru
      _
    // Predicated region
    $region10: #{tpu_custom_call.1} parent=1 // pred_check
      _
    $region11: #{tpu_custom_call.1} parent=1 // pred_check_branch
      %38 = sbr.rel (0) target = $region13
    $region12: #{tpu_custom_call.1} parent=1 // pred_region
      %40 = vsyncadd [#allocation6], 0
      %s42 = sshll.u32 %s2, 4
      %s43 = int_to_ptr.hbm [resolvable:$true] %s42
      %s44 = sshll.u32 [#allocation7], 4
      %s45 = int_to_ptr.vmem [resolvable:$true] %s44
      %47 = dma.hbm_to_vmem [thread:$0]  %s43, 128, %s45, [#allocation6]
    $region13: #{tpu_custom_call.1} parent=1 // pred_fallthru
      _
    // Predicated region
    $region14: #{tpu_custom_call.1} parent=1 // pred_check
      _
    $region15: #{tpu_custom_call.1} parent=1 // pred_check_branch
      %49 = sbr.rel (0) target = $region17
    $region16: #{tpu_custom_call.1} parent=1 // pred_region
      %51 = dma.done [#allocation3], 512
    $region17: #{tpu_custom_call.1} parent=1 // pred_fallthru
      _
    // Predicated region
    $region18: #{tpu_custom_call.1} parent=1 // pred_check
      _
    $region19: #{tpu_custom_call.1} parent=1 // pred_check_branch
      %53 = sbr.rel (0) target = $region21
    $region20: #{tpu_custom_call.1} parent=1 // pred_region
      %55 = dma.done [#allocation6], 16384
    $region21: #{tpu_custom_call.1} parent=1 // pred_fallthru
      _
    // Predicated region
    $region22: #{tpu_custom_call.1} parent=1 // pred_check
      _
    $region23: #{tpu_custom_call.1} parent=1 // pred_check_branch
      %57 = sbr.rel (0) target = $region25
    $region24: #{tpu_custom_call.1} parent=1 // pred_region
      %59 = dma.done [#allocation6], 128
    $region25: #{tpu_custom_call.1} parent=1 // pred_fallthru
      _
    %v60 = vld [vmem:[#allocation2] sm:$0xff]
    %v61 = vld [vmem:[#allocation2 + $0x10] sm:$0xff]
    %v62 = vld [vmem:[#allocation2 + $0x8] sm:$0xff]
    %v63 = vld [vmem:[#allocation2 + $0x18] sm:$0xff]
    %v64 = vld [vmem:[#allocation5] sm:$0xff]
    %v65 = vld [vmem:[#allocation5 + $0x8] sm:$0xff]
    %v66 = vld [vmem:[#allocation5 + $0x10] sm:$0xff]
    %v67 = vld [vmem:[#allocation5 + $0x18] sm:$0xff]
    %v68 = vld [vmem:[#allocation5 + $0x20] sm:$0xff]
    %v69 = vld [vmem:[#allocation5 + $0x28] sm:$0xff]
    %v70 = vld [vmem:[#allocation5 + $0x30] sm:$0xff]
    %v71 = vld [vmem:[#allocation5 + $0x38] sm:$0xff]
    %v72 = vld [vmem:[#allocation5 + $0x40] sm:$0xff]
    %v73 = vld [vmem:[#allocation5 + $0x48] sm:$0xff]
    %v74 = vld [vmem:[#allocation5 + $0x50] sm:$0xff]
    %v75 = vld [vmem:[#allocation5 + $0x58] sm:$0xff]
    %v76 = vld [vmem:[#allocation5 + $0x60] sm:$0xff]
    %v77 = vld [vmem:[#allocation5 + $0x68] sm:$0xff]
    %v78 = vld [vmem:[#allocation5 + $0x70] sm:$0xff]
    %v79 = vld [vmem:[#allocation5 + $0x78] sm:$0xff]
    %v80 = vld [vmem:[#allocation5 + $0x80] sm:$0xff]
    %v81 = vld [vmem:[#allocation5 + $0x88] sm:$0xff]
    %v82 = vld [vmem:[#allocation5 + $0x90] sm:$0xff]
    %v83 = vld [vmem:[#allocation5 + $0x98] sm:$0xff]
    %v84 = vld [vmem:[#allocation5 + $0xa0] sm:$0xff]
    %v85 = vld [vmem:[#allocation5 + $0xa8] sm:$0xff]
    %v86 = vld [vmem:[#allocation5 + $0xb0] sm:$0xff]
    %v87 = vld [vmem:[#allocation5 + $0xb8] sm:$0xff]
    %v88 = vld [vmem:[#allocation5 + $0xc0] sm:$0xff]
    %v89 = vld [vmem:[#allocation5 + $0xc8] sm:$0xff]
    %v90 = vld [vmem:[#allocation5 + $0xd0] sm:$0xff]
    %v91 = vld [vmem:[#allocation5 + $0xd8] sm:$0xff]
    %v92 = vld [vmem:[#allocation5 + $0xe0] sm:$0xff]
    %v93 = vld [vmem:[#allocation5 + $0xe8] sm:$0xff]
    %v94 = vld [vmem:[#allocation5 + $0xf0] sm:$0xff]
    %v95 = vld [vmem:[#allocation5 + $0xf8] sm:$0xff]
    %v96 = vld [vmem:[#allocation5 + $0x100] sm:$0xff]
    %v97 = vld [vmem:[#allocation5 + $0x108] sm:$0xff]
    %v98 = vld [vmem:[#allocation5 + $0x110] sm:$0xff]
    %v99 = vld [vmem:[#allocation5 + $0x118] sm:$0xff]
    %v100 = vld [vmem:[#allocation5 + $0x120] sm:$0xff]
    %v101 = vld [vmem:[#allocation5 + $0x128] sm:$0xff]
    %v102 = vld [vmem:[#allocation5 + $0x130] sm:$0xff]
    %v103 = vld [vmem:[#allocation5 + $0x138] sm:$0xff]
    %v104 = vld [vmem:[#allocation5 + $0x140] sm:$0xff]
    %v105 = vld [vmem:[#allocation5 + $0x148] sm:$0xff]
    %v106 = vld [vmem:[#allocation5 + $0x150] sm:$0xff]
    %v107 = vld [vmem:[#allocation5 + $0x158] sm:$0xff]
    %v108 = vld [vmem:[#allocation5 + $0x160] sm:$0xff]
    %v109 = vld [vmem:[#allocation5 + $0x168] sm:$0xff]
    %v110 = vld [vmem:[#allocation5 + $0x170] sm:$0xff]
    %v111 = vld [vmem:[#allocation5 + $0x178] sm:$0xff]
    %v112 = vld [vmem:[#allocation5 + $0x180] sm:$0xff]
    %v113 = vld [vmem:[#allocation5 + $0x188] sm:$0xff]
    %v114 = vld [vmem:[#allocation5 + $0x190] sm:$0xff]
    %v115 = vld [vmem:[#allocation5 + $0x198] sm:$0xff]
    %v116 = vld [vmem:[#allocation5 + $0x1a0] sm:$0xff]
    %v117 = vld [vmem:[#allocation5 + $0x1a8] sm:$0xff]
    %v118 = vld [vmem:[#allocation5 + $0x1b0] sm:$0xff]
    %v119 = vld [vmem:[#allocation5 + $0x1b8] sm:$0xff]
    %v120 = vld [vmem:[#allocation5 + $0x1c0] sm:$0xff]
    %v121 = vld [vmem:[#allocation5 + $0x1c8] sm:$0xff]
    %v122 = vld [vmem:[#allocation5 + $0x1d0] sm:$0xff]
    %v123 = vld [vmem:[#allocation5 + $0x1d8] sm:$0xff]
    %v124 = vld [vmem:[#allocation5 + $0x1e0] sm:$0xff]
    %v125 = vld [vmem:[#allocation5 + $0x1e8] sm:$0xff]
    %v126 = vld [vmem:[#allocation5 + $0x1f0] sm:$0xff]
    %v127 = vld [vmem:[#allocation5 + $0x1f8] sm:$0xff]
    %v128 = vld [vmem:[#allocation5 + $0x200] sm:$0xff]
    %v129 = vld [vmem:[#allocation5 + $0x208] sm:$0xff]
    %v130 = vld [vmem:[#allocation5 + $0x210] sm:$0xff]
    %v131 = vld [vmem:[#allocation5 + $0x218] sm:$0xff]
    %v132 = vld [vmem:[#allocation5 + $0x220] sm:$0xff]
    %v133 = vld [vmem:[#allocation5 + $0x228] sm:$0xff]
    %v134 = vld [vmem:[#allocation5 + $0x230] sm:$0xff]
    %v135 = vld [vmem:[#allocation5 + $0x238] sm:$0xff]
    %v136 = vld [vmem:[#allocation5 + $0x240] sm:$0xff]
    %v137 = vld [vmem:[#allocation5 + $0x248] sm:$0xff]
    %v138 = vld [vmem:[#allocation5 + $0x250] sm:$0xff]
    %v139 = vld [vmem:[#allocation5 + $0x258] sm:$0xff]
    %v140 = vld [vmem:[#allocation5 + $0x260] sm:$0xff]
    %v141 = vld [vmem:[#allocation5 + $0x268] sm:$0xff]
    %v142 = vld [vmem:[#allocation5 + $0x270] sm:$0xff]
    %v143 = vld [vmem:[#allocation5 + $0x278] sm:$0xff]
    %v144 = vld [vmem:[#allocation5 + $0x280] sm:$0xff]
    %v145 = vld [vmem:[#allocation5 + $0x288] sm:$0xff]
    %v146 = vld [vmem:[#allocation5 + $0x290] sm:$0xff]
    %v147 = vld [vmem:[#allocation5 + $0x298] sm:$0xff]
    %v148 = vld [vmem:[#allocation5 + $0x2a0] sm:$0xff]
    %v149 = vld [vmem:[#allocation5 + $0x2a8] sm:$0xff]
    %v150 = vld [vmem:[#allocation5 + $0x2b0] sm:$0xff]
    %v151 = vld [vmem:[#allocation5 + $0x2b8] sm:$0xff]
    %v152 = vld [vmem:[#allocation5 + $0x2c0] sm:$0xff]
    %v153 = vld [vmem:[#allocation5 + $0x2c8] sm:$0xff]
    %v154 = vld [vmem:[#allocation5 + $0x2d0] sm:$0xff]
    %v155 = vld [vmem:[#allocation5 + $0x2d8] sm:$0xff]
    %v156 = vld [vmem:[#allocation5 + $0x2e0] sm:$0xff]
    %v157 = vld [vmem:[#allocation5 + $0x2e8] sm:$0xff]
    %v158 = vld [vmem:[#allocation5 + $0x2f0] sm:$0xff]
    %v159 = vld [vmem:[#allocation5 + $0x2f8] sm:$0xff]
    %v160 = vld [vmem:[#allocation5 + $0x300] sm:$0xff]
    %v161 = vld [vmem:[#allocation5 + $0x308] sm:$0xff]
    %v162 = vld [vmem:[#allocation5 + $0x310] sm:$0xff]
    %v163 = vld [vmem:[#allocation5 + $0x318] sm:$0xff]
    %v164 = vld [vmem:[#allocation5 + $0x320] sm:$0xff]
    %v165 = vld [vmem:[#allocation5 + $0x328] sm:$0xff]
    %v166 = vld [vmem:[#allocation5 + $0x330] sm:$0xff]
    %v167 = vld [vmem:[#allocation5 + $0x338] sm:$0xff]
    %v168 = vld [vmem:[#allocation5 + $0x340] sm:$0xff]
    %v169 = vld [vmem:[#allocation5 + $0x348] sm:$0xff]
    %v170 = vld [vmem:[#allocation5 + $0x350] sm:$0xff]
    %v171 = vld [vmem:[#allocation5 + $0x358] sm:$0xff]
    %v172 = vld [vmem:[#allocation5 + $0x360] sm:$0xff]
    %v173 = vld [vmem:[#allocation5 + $0x368] sm:$0xff]
    %v174 = vld [vmem:[#allocation5 + $0x370] sm:$0xff]
    %v175 = vld [vmem:[#allocation5 + $0x378] sm:$0xff]
    %v176 = vld [vmem:[#allocation5 + $0x384] sm:$0xf]
    %v177 = vld [vmem:[#allocation5 + $0x38c] sm:$0xf]
    %v178 = vld [vmem:[#allocation5 + $0x394] sm:$0xf]
    %v179 = vld [vmem:[#allocation5 + $0x39c] sm:$0xf]
    %v180 = vld [vmem:[#allocation5 + $0x3a4] sm:$0xf]
    %v181 = vld [vmem:[#allocation5 + $0x3ac] sm:$0xf]
    %v182 = vld [vmem:[#allocation5 + $0x3b4] sm:$0xf]
    %v183 = vld [vmem:[#allocation5 + $0x3bc] sm:$0xf]
    %v184 = vld [vmem:[#allocation5 + $0x3c4] sm:$0xf]
    %v185 = vld [vmem:[#allocation5 + $0x3cc] sm:$0xf]
    %v186 = vld [vmem:[#allocation5 + $0x3d4] sm:$0xf]
    %v187 = vld [vmem:[#allocation5 + $0x3dc] sm:$0xf]
    %v188 = vld [vmem:[#allocation5 + $0x3e4] sm:$0xf]
    %v189 = vld [vmem:[#allocation5 + $0x3ec] sm:$0xf]
    %v190 = vld [vmem:[#allocation5 + $0x3f4] sm:$0xf]
    %v191 = vld [vmem:[#allocation5 + $0x3fc] sm:$0xf]
    %v192 = vld [vmem:[#allocation7] sm:$0x1]
    %v193 = vld [vmem:[#allocation7 + $0x1] sm:$0x1]
    %v194 = vld [vmem:[#allocation7 + $0x2] sm:$0x1]
    %v195 = vld [vmem:[#allocation7 + $0x3] sm:$0x1]
    %v196 = vld [vmem:[#allocation7 + $0x4] sm:$0x1]
    %v199 = vunpack.c.l.b16 %v60
    %v200 = vunpack.c.h.b16 %v60
    %v201 = vunpack.c.l.b16 %v61
    %v202 = vunpack.c.h.b16 %v61
    %v203 = vpack.c.b16 %v201, %v199
    %v204 = vpack.c.b16 %v202, %v200
    %v239 = vunpack.c.l.b16 %v64
    %v240 = vunpack.c.h.b16 %v64
    %v241 = vunpack.c.l.b16 %v65
    %v242 = vunpack.c.h.b16 %v65
    %v243 = vunpack.c.l.b16 %v66
    %v244 = vunpack.c.h.b16 %v66
    %v245 = vunpack.c.l.b16 %v67
    %v246 = vunpack.c.h.b16 %v67
    %v247 = vunpack.c.l.b16 %v68
    %v248 = vunpack.c.h.b16 %v68
    %v249 = vunpack.c.l.b16 %v69
    %v250 = vunpack.c.h.b16 %v69
    %v251 = vunpack.c.l.b16 %v70
    %v252 = vunpack.c.h.b16 %v70
    %v253 = vunpack.c.l.b16 %v71
    %v254 = vunpack.c.h.b16 %v71
    %v255 = vunpack.c.l.b16 %v72
    %v256 = vunpack.c.h.b16 %v72
    %v257 = vunpack.c.l.b16 %v73
    %v258 = vunpack.c.h.b16 %v73
    %v259 = vunpack.c.l.b16 %v74
    %v260 = vunpack.c.h.b16 %v74
    %v261 = vunpack.c.l.b16 %v75
    %v262 = vunpack.c.h.b16 %v75
    %v263 = vunpack.c.l.b16 %v76
    %v264 = vunpack.c.h.b16 %v76
    %v265 = vunpack.c.l.b16 %v77
    %v266 = vunpack.c.h.b16 %v77
    %v267 = vunpack.c.l.b16 %v78
    %v268 = vunpack.c.h.b16 %v78
    %v269 = vunpack.c.l.b16 %v79
    %v270 = vunpack.c.h.b16 %v79
    %v271 = vunpack.c.l.b16 %v80
    %v272 = vunpack.c.h.b16 %v80
    %v273 = vunpack.c.l.b16 %v81
    %v274 = vunpack.c.h.b16 %v81
    %v275 = vunpack.c.l.b16 %v82
    %v276 = vunpack.c.h.b16 %v82
    %v277 = vunpack.c.l.b16 %v83
    %v278 = vunpack.c.h.b16 %v83
    %v279 = vunpack.c.l.b16 %v84
    %v280 = vunpack.c.h.b16 %v84
    %v281 = vunpack.c.l.b16 %v85
    %v282 = vunpack.c.h.b16 %v85
    %v283 = vunpack.c.l.b16 %v86
    %v284 = vunpack.c.h.b16 %v86
    %v285 = vunpack.c.l.b16 %v87
    %v286 = vunpack.c.h.b16 %v87
    %v287 = vunpack.c.l.b16 %v88
    %v288 = vunpack.c.h.b16 %v88
    %v289 = vunpack.c.l.b16 %v89
    %v290 = vunpack.c.h.b16 %v89
    %v291 = vunpack.c.l.b16 %v90
    %v292 = vunpack.c.h.b16 %v90
    %v293 = vunpack.c.l.b16 %v91
    %v294 = vunpack.c.h.b16 %v91
    %v295 = vunpack.c.l.b16 %v92
    %v296 = vunpack.c.h.b16 %v92
    %v297 = vunpack.c.l.b16 %v93
    %v298 = vunpack.c.h.b16 %v93
    %v299 = vunpack.c.l.b16 %v94
    %v300 = vunpack.c.h.b16 %v94
    %v301 = vunpack.c.l.b16 %v95
    %v302 = vunpack.c.h.b16 %v95
    %v303 = vpack.c.b16 %v241, %v239
    %v304 = vpack.c.b16 %v242, %v240
    %v305 = vpack.c.b16 %v245, %v243
    %v306 = vpack.c.b16 %v246, %v244
    %v307 = vpack.c.b16 %v249, %v247
    %v308 = vpack.c.b16 %v250, %v248
    %v309 = vpack.c.b16 %v253, %v251
    %v310 = vpack.c.b16 %v254, %v252
    %v311 = vpack.c.b16 %v257, %v255
    %v312 = vpack.c.b16 %v258, %v256
    %v313 = vpack.c.b16 %v261, %v259
    %v314 = vpack.c.b16 %v262, %v260
    %v315 = vpack.c.b16 %v265, %v263
    %v316 = vpack.c.b16 %v266, %v264
    %v317 = vpack.c.b16 %v269, %v267
    %v318 = vpack.c.b16 %v270, %v268
    %v319 = vpack.c.b16 %v273, %v271
    %v320 = vpack.c.b16 %v274, %v272
    %v321 = vpack.c.b16 %v277, %v275
    %v322 = vpack.c.b16 %v278, %v276
    %v323 = vpack.c.b16 %v281, %v279
    %v324 = vpack.c.b16 %v282, %v280
    %v325 = vpack.c.b16 %v285, %v283
    %v326 = vpack.c.b16 %v286, %v284
    %v327 = vpack.c.b16 %v289, %v287
    %v328 = vpack.c.b16 %v290, %v288
    %v329 = vpack.c.b16 %v293, %v291
    %v330 = vpack.c.b16 %v294, %v292
    %v331 = vpack.c.b16 %v297, %v295
    %v332 = vpack.c.b16 %v298, %v296
    %v333 = vpack.c.b16 %v301, %v299
    %v334 = vpack.c.b16 %v302, %v300
    %367 = vmatpush.bf16.msra.mxu0 %v317
    %368 = vmatpush.bf16.msra.mxu0 %v315
    %369 = vmatpush.bf16.msra.mxu0 %v313
    %370 = vmatpush.bf16.msra.mxu0 %v311
    %371 = vmatpush.bf16.msra.mxu0 %v309
    %372 = vmatpush.bf16.msra.mxu0 %v307
    %373 = vmatpush.bf16.msra.mxu0 %v305
    %374 = vmatpush.bf16.msra.mxu0 %v303
    %375 = vmatmul.bf16.gmra.mxu0 %v203
    %v376 = vpop.f32.mrf.mxu0
    %v377 = vadd.f32 0.0, %v376
    %v378 = vpop.f32.mrf.mxu0
    %v379 = vadd.f32 0.0, %v378
    %380 = vdwg.mxu0
    %381 = vmatpush.bf16.msra.mxu0 %v333
    %382 = vmatpush.bf16.msra.mxu0 %v331
    %383 = vmatpush.bf16.msra.mxu0 %v329
    %384 = vmatpush.bf16.msra.mxu0 %v327
    %385 = vmatpush.bf16.msra.mxu0 %v325
    %386 = vmatpush.bf16.msra.mxu0 %v323
    %387 = vmatpush.bf16.msra.mxu0 %v321
    %388 = vmatpush.bf16.msra.mxu0 %v319
    %389 = vmatmul.bf16.gmra.mxu0 %v204
    %v390 = vpop.f32.mrf.mxu0
    %v391 = vadd.f32 %v377, %v390
    %v392 = vpop.f32.mrf.mxu0
    %v393 = vadd.f32 %v379, %v392
    %394 = vdwg.mxu0
    %395 = vmatpush.bf16.msra.mxu0 %v318
    %396 = vmatpush.bf16.msra.mxu0 %v316
    %397 = vmatpush.bf16.msra.mxu0 %v314
    %398 = vmatpush.bf16.msra.mxu0 %v312
    %399 = vmatpush.bf16.msra.mxu0 %v310
    %400 = vmatpush.bf16.msra.mxu0 %v308
    %401 = vmatpush.bf16.msra.mxu0 %v306
    %402 = vmatpush.bf16.msra.mxu0 %v304
    %403 = vmatmul.bf16.gmra.mxu0 %v203
    %v404 = vpop.f32.mrf.mxu0
    %v405 = vadd.f32 0.0, %v404
    %v406 = vpop.f32.mrf.mxu0
    %v407 = vadd.f32 0.0, %v406
    %408 = vdwg.mxu0
    %409 = vmatpush.bf16.msra.mxu0 %v334
    %410 = vmatpush.bf16.msra.mxu0 %v332
    %411 = vmatpush.bf16.msra.mxu0 %v330
    %412 = vmatpush.bf16.msra.mxu0 %v328
    %413 = vmatpush.bf16.msra.mxu0 %v326
    %414 = vmatpush.bf16.msra.mxu0 %v324
    %415 = vmatpush.bf16.msra.mxu0 %v322
    %416 = vmatpush.bf16.msra.mxu0 %v320
    %417 = vmatmul.bf16.gmra.mxu0 %v204
    %v418 = vpop.f32.mrf.mxu0
    %v419 = vadd.f32 %v405, %v418
    %v420 = vpop.f32.mrf.mxu0
    %v421 = vadd.f32 %v407, %v420
    %422 = vdwg.mxu0
    %v425 = vunpack.c.l.b16 %v62
    %v426 = vunpack.c.h.b16 %v62
    %v427 = vunpack.c.l.b16 %v63
    %v428 = vunpack.c.h.b16 %v63
    %v429 = vpack.c.b16 %v427, %v425
    %v430 = vpack.c.b16 %v428, %v426
    %v465 = vunpack.c.l.b16 %v96
    %v466 = vunpack.c.h.b16 %v96
    %v467 = vunpack.c.l.b16 %v97
    %v468 = vunpack.c.h.b16 %v97
    %v469 = vunpack.c.l.b16 %v98
    %v470 = vunpack.c.h.b16 %v98
    %v471 = vunpack.c.l.b16 %v99
    %v472 = vunpack.c.h.b16 %v99
    %v473 = vunpack.c.l.b16 %v100
    %v474 = vunpack.c.h.b16 %v100
    %v475 = vunpack.c.l.b16 %v101
    %v476 = vunpack.c.h.b16 %v101
    %v477 = vunpack.c.l.b16 %v102
    %v478 = vunpack.c.h.b16 %v102
    %v479 = vunpack.c.l.b16 %v103
    %v480 = vunpack.c.h.b16 %v103
    %v481 = vunpack.c.l.b16 %v104
    %v482 = vunpack.c.h.b16 %v104
    %v483 = vunpack.c.l.b16 %v105
    %v484 = vunpack.c.h.b16 %v105
    %v485 = vunpack.c.l.b16 %v106
    %v486 = vunpack.c.h.b16 %v106
    %v487 = vunpack.c.l.b16 %v107
    %v488 = vunpack.c.h.b16 %v107
    %v489 = vunpack.c.l.b16 %v108
    %v490 = vunpack.c.h.b16 %v108
    %v491 = vunpack.c.l.b16 %v109
    %v492 = vunpack.c.h.b16 %v109
    %v493 = vunpack.c.l.b16 %v110
    %v494 = vunpack.c.h.b16 %v110
    %v495 = vunpack.c.l.b16 %v111
    %v496 = vunpack.c.h.b16 %v111
    %v497 = vunpack.c.l.b16 %v112
    %v498 = vunpack.c.h.b16 %v112
    %v499 = vunpack.c.l.b16 %v113
    %v500 = vunpack.c.h.b16 %v113
    %v501 = vunpack.c.l.b16 %v114
    %v502 = vunpack.c.h.b16 %v114
    %v503 = vunpack.c.l.b16 %v115
    %v504 = vunpack.c.h.b16 %v115
    %v505 = vunpack.c.l.b16 %v116
    %v506 = vunpack.c.h.b16 %v116
    %v507 = vunpack.c.l.b16 %v117
    %v508 = vunpack.c.h.b16 %v117
    %v509 = vunpack.c.l.b16 %v118
    %v510 = vunpack.c.h.b16 %v118
    %v511 = vunpack.c.l.b16 %v119
    %v512 = vunpack.c.h.b16 %v119
    %v513 = vunpack.c.l.b16 %v120
    %v514 = vunpack.c.h.b16 %v120
    %v515 = vunpack.c.l.b16 %v121
    %v516 = vunpack.c.h.b16 %v121
    %v517 = vunpack.c.l.b16 %v122
    %v518 = vunpack.c.h.b16 %v122
    %v519 = vunpack.c.l.b16 %v123
    %v520 = vunpack.c.h.b16 %v123
    %v521 = vunpack.c.l.b16 %v124
    %v522 = vunpack.c.h.b16 %v124
    %v523 = vunpack.c.l.b16 %v125
    %v524 = vunpack.c.h.b16 %v125
    %v525 = vunpack.c.l.b16 %v126
    %v526 = vunpack.c.h.b16 %v126
    %v527 = vunpack.c.l.b16 %v127
    %v528 = vunpack.c.h.b16 %v127
    %v529 = vpack.c.b16 %v467, %v465
    %v530 = vpack.c.b16 %v468, %v466
    %v531 = vpack.c.b16 %v471, %v469
    %v532 = vpack.c.b16 %v472, %v470
    %v533 = vpack.c.b16 %v475, %v473
    %v534 = vpack.c.b16 %v476, %v474
    %v535 = vpack.c.b16 %v479, %v477
    %v536 = vpack.c.b16 %v480, %v478
    %v537 = vpack.c.b16 %v483, %v481
    %v538 = vpack.c.b16 %v484, %v482
    %v539 = vpack.c.b16 %v487, %v485
    %v540 = vpack.c.b16 %v488, %v486
    %v541 = vpack.c.b16 %v491, %v489
    %v542 = vpack.c.b16 %v492, %v490
    %v543 = vpack.c.b16 %v495, %v493
    %v544 = vpack.c.b16 %v496, %v494
    %v545 = vpack.c.b16 %v499, %v497
    %v546 = vpack.c.b16 %v500, %v498
    %v547 = vpack.c.b16 %v503, %v501
    %v548 = vpack.c.b16 %v504, %v502
    %v549 = vpack.c.b16 %v507, %v505
    %v550 = vpack.c.b16 %v508, %v506
    %v551 = vpack.c.b16 %v511, %v509
    %v552 = vpack.c.b16 %v512, %v510
    %v553 = vpack.c.b16 %v515, %v513
    %v554 = vpack.c.b16 %v516, %v514
    %v555 = vpack.c.b16 %v519, %v517
    %v556 = vpack.c.b16 %v520, %v518
    %v557 = vpack.c.b16 %v523, %v521
    %v558 = vpack.c.b16 %v524, %v522
    %v559 = vpack.c.b16 %v527, %v525
    %v560 = vpack.c.b16 %v528, %v526
    %593 = vmatpush.bf16.msra.mxu0 %v543
    %594 = vmatpush.bf16.msra.mxu0 %v541
    %595 = vmatpush.bf16.msra.mxu0 %v539
    %596 = vmatpush.bf16.msra.mxu0 %v537
    %597 = vmatpush.bf16.msra.mxu0 %v535
    %598 = vmatpush.bf16.msra.mxu0 %v533
    %599 = vmatpush.bf16.msra.mxu0 %v531
    %600 = vmatpush.bf16.msra.mxu0 %v529
    %601 = vmatmul.bf16.gmra.mxu0 %v429
    %v602 = vpop.f32.mrf.mxu0
    %v603 = vadd.f32 0.0, %v602
    %v604 = vpop.f32.mrf.mxu0
    %v605 = vadd.f32 0.0, %v604
    %606 = vdwg.mxu0
    %607 = vmatpush.bf16.msra.mxu0 %v559
    %608 = vmatpush.bf16.msra.mxu0 %v557
    %609 = vmatpush.bf16.msra.mxu0 %v555
    %610 = vmatpush.bf16.msra.mxu0 %v553
    %611 = vmatpush.bf16.msra.mxu0 %v551
    %612 = vmatpush.bf16.msra.mxu0 %v549
    %613 = vmatpush.bf16.msra.mxu0 %v547
    %614 = vmatpush.bf16.msra.mxu0 %v545
    %615 = vmatmul.bf16.gmra.mxu0 %v430
    %v616 = vpop.f32.mrf.mxu0
    %v617 = vadd.f32 %v603, %v616
    %v618 = vpop.f32.mrf.mxu0
    %v619 = vadd.f32 %v605, %v618
    %620 = vdwg.mxu0
    %621 = vmatpush.bf16.msra.mxu0 %v544
    %622 = vmatpush.bf16.msra.mxu0 %v542
    %623 = vmatpush.bf16.msra.mxu0 %v540
    %624 = vmatpush.bf16.msra.mxu0 %v538
    %625 = vmatpush.bf16.msra.mxu0 %v536
    %626 = vmatpush.bf16.msra.mxu0 %v534
    %627 = vmatpush.bf16.msra.mxu0 %v532
    %628 = vmatpush.bf16.msra.mxu0 %v530
    %629 = vmatmul.bf16.gmra.mxu0 %v429
    %v630 = vpop.f32.mrf.mxu0
    %v631 = vadd.f32 0.0, %v630
    %v632 = vpop.f32.mrf.mxu0
    %v633 = vadd.f32 0.0, %v632
    %634 = vdwg.mxu0
    %635 = vmatpush.bf16.msra.mxu0 %v560
    %636 = vmatpush.bf16.msra.mxu0 %v558
    %637 = vmatpush.bf16.msra.mxu0 %v556
    %638 = vmatpush.bf16.msra.mxu0 %v554
    %639 = vmatpush.bf16.msra.mxu0 %v552
    %640 = vmatpush.bf16.msra.mxu0 %v550
    %641 = vmatpush.bf16.msra.mxu0 %v548
    %642 = vmatpush.bf16.msra.mxu0 %v546
    %643 = vmatmul.bf16.gmra.mxu0 %v430
    %v644 = vpop.f32.mrf.mxu0
    %v645 = vadd.f32 %v631, %v644
    %v646 = vpop.f32.mrf.mxu0
    %v647 = vadd.f32 %v633, %v646
    %648 = vdwg.mxu0
    %v649 = vperm.slane %v192, 0
    %v650 = vadd.f32 %v391, %v649
    %v651 = vadd.f32 %v393, %v649
    %v652 = vmax.f32 %v650, 0.0
    %v653 = vmax.f32 %v651, 0.0
    %v654 = vpack.c.bf16 %v653, %v652
    %v671 = vunpack.c.l.b16 %v128
    %v672 = vunpack.c.h.b16 %v128
    %v673 = vunpack.c.l.b16 %v129
    %v674 = vunpack.c.h.b16 %v129
    %v675 = vunpack.c.l.b16 %v130
    %v676 = vunpack.c.h.b16 %v130
    %v677 = vunpack.c.l.b16 %v131
    %v678 = vunpack.c.h.b16 %v131
    %v679 = vunpack.c.l.b16 %v132
    %v680 = vunpack.c.h.b16 %v132
    %v681 = vunpack.c.l.b16 %v133
    %v682 = vunpack.c.h.b16 %v133
    %v683 = vunpack.c.l.b16 %v134
    %v684 = vunpack.c.h.b16 %v134
    %v685 = vunpack.c.l.b16 %v135
    %v686 = vunpack.c.h.b16 %v135
    %v687 = vunpack.c.l.b16 %v136
    %v688 = vunpack.c.h.b16 %v136
    %v689 = vunpack.c.l.b16 %v137
    %v690 = vunpack.c.h.b16 %v137
    %v691 = vunpack.c.l.b16 %v138
    %v692 = vunpack.c.h.b16 %v138
    %v693 = vunpack.c.l.b16 %v139
    %v694 = vunpack.c.h.b16 %v139
    %v695 = vunpack.c.l.b16 %v140
    %v696 = vunpack.c.h.b16 %v140
    %v697 = vunpack.c.l.b16 %v141
    %v698 = vunpack.c.h.b16 %v141
    %v699 = vunpack.c.l.b16 %v142
    %v700 = vunpack.c.h.b16 %v142
    %v701 = vunpack.c.l.b16 %v143
    %v702 = vunpack.c.h.b16 %v143
    %v703 = vpack.c.b16 %v673, %v671
    %v704 = vpack.c.b16 %v674, %v672
    %v705 = vpack.c.b16 %v677, %v675
    %v706 = vpack.c.b16 %v678, %v676
    %v707 = vpack.c.b16 %v681, %v679
    %v708 = vpack.c.b16 %v682, %v680
    %v709 = vpack.c.b16 %v685, %v683
    %v710 = vpack.c.b16 %v686, %v684
    %v711 = vpack.c.b16 %v689, %v687
    %v712 = vpack.c.b16 %v690, %v688
    %v713 = vpack.c.b16 %v693, %v691
    %v714 = vpack.c.b16 %v694, %v692
    %v715 = vpack.c.b16 %v697, %v695
    %v716 = vpack.c.b16 %v698, %v696
    %v717 = vpack.c.b16 %v701, %v699
    %v718 = vpack.c.b16 %v702, %v700
    %735 = vmatpush.bf16.msra.mxu0 %v717
    %736 = vmatpush.bf16.msra.mxu0 %v715
    %737 = vmatpush.bf16.msra.mxu0 %v713
    %738 = vmatpush.bf16.msra.mxu0 %v711
    %739 = vmatpush.bf16.msra.mxu0 %v709
    %740 = vmatpush.bf16.msra.mxu0 %v707
    %741 = vmatpush.bf16.msra.mxu0 %v705
    %742 = vmatpush.bf16.msra.mxu0 %v703
    %743 = vmatmul.bf16.gmra.mxu0 %v654
    %v744 = vpop.f32.mrf.mxu0
    %v745 = vadd.f32 0.0, %v744
    %v746 = vpop.f32.mrf.mxu0
    %v747 = vadd.f32 0.0, %v746
    %748 = vdwg.mxu0
    %749 = vmatpush.bf16.msra.mxu0 %v718
    %750 = vmatpush.bf16.msra.mxu0 %v716
    %751 = vmatpush.bf16.msra.mxu0 %v714
    %752 = vmatpush.bf16.msra.mxu0 %v712
    %753 = vmatpush.bf16.msra.mxu0 %v710
    %754 = vmatpush.bf16.msra.mxu0 %v708
    %755 = vmatpush.bf16.msra.mxu0 %v706
    %756 = vmatpush.bf16.msra.mxu0 %v704
    %757 = vmatmul.bf16.gmra.mxu0 %v654
    %v758 = vpop.f32.mrf.mxu0
    %v759 = vadd.f32 0.0, %v758
    %v760 = vpop.f32.mrf.mxu0
    %v761 = vadd.f32 0.0, %v760
    %762 = vdwg.mxu0
    %v763 = vadd.f32 %v617, %v745
    %v764 = vadd.f32 %v619, %v747
    %v765 = vperm.slane %v193, 0
    %v766 = vadd.f32 %v763, %v765
    %v767 = vadd.f32 %v764, %v765
    %v768 = vmax.f32 %v766, 0.0
    %v769 = vmax.f32 %v767, 0.0
    %v770 = vpack.c.bf16 %v769, %v768
    %v787 = vunpack.c.l.b16 %v144
    %v788 = vunpack.c.h.b16 %v144
    %v789 = vunpack.c.l.b16 %v145
    %v790 = vunpack.c.h.b16 %v145
    %v791 = vunpack.c.l.b16 %v146
    %v792 = vunpack.c.h.b16 %v146
    %v793 = vunpack.c.l.b16 %v147
    %v794 = vunpack.c.h.b16 %v147
    %v795 = vunpack.c.l.b16 %v148
    %v796 = vunpack.c.h.b16 %v148
    %v797 = vunpack.c.l.b16 %v149
    %v798 = vunpack.c.h.b16 %v149
    %v799 = vunpack.c.l.b16 %v150
    %v800 = vunpack.c.h.b16 %v150
    %v801 = vunpack.c.l.b16 %v151
    %v802 = vunpack.c.h.b16 %v151
    %v803 = vunpack.c.l.b16 %v152
    %v804 = vunpack.c.h.b16 %v152
    %v805 = vunpack.c.l.b16 %v153
    %v806 = vunpack.c.h.b16 %v153
    %v807 = vunpack.c.l.b16 %v154
    %v808 = vunpack.c.h.b16 %v154
    %v809 = vunpack.c.l.b16 %v155
    %v810 = vunpack.c.h.b16 %v155
    %v811 = vunpack.c.l.b16 %v156
    %v812 = vunpack.c.h.b16 %v156
    %v813 = vunpack.c.l.b16 %v157
    %v814 = vunpack.c.h.b16 %v157
    %v815 = vunpack.c.l.b16 %v158
    %v816 = vunpack.c.h.b16 %v158
    %v817 = vunpack.c.l.b16 %v159
    %v818 = vunpack.c.h.b16 %v159
    %v819 = vpack.c.b16 %v789, %v787
    %v820 = vpack.c.b16 %v790, %v788
    %v821 = vpack.c.b16 %v793, %v791
    %v822 = vpack.c.b16 %v794, %v792
    %v823 = vpack.c.b16 %v797, %v795
    %v824 = vpack.c.b16 %v798, %v796
    %v825 = vpack.c.b16 %v801, %v799
    %v826 = vpack.c.b16 %v802, %v800
    %v827 = vpack.c.b16 %v805, %v803
    %v828 = vpack.c.b16 %v806, %v804
    %v829 = vpack.c.b16 %v809, %v807
    %v830 = vpack.c.b16 %v810, %v808
    %v831 = vpack.c.b16 %v813, %v811
    %v832 = vpack.c.b16 %v814, %v812
    %v833 = vpack.c.b16 %v817, %v815
    %v834 = vpack.c.b16 %v818, %v816
    %851 = vmatpush.bf16.msra.mxu0 %v833
    %852 = vmatpush.bf16.msra.mxu0 %v831
    %853 = vmatpush.bf16.msra.mxu0 %v829
    %854 = vmatpush.bf16.msra.mxu0 %v827
    %855 = vmatpush.bf16.msra.mxu0 %v825
    %856 = vmatpush.bf16.msra.mxu0 %v823
    %857 = vmatpush.bf16.msra.mxu0 %v821
    %858 = vmatpush.bf16.msra.mxu0 %v819
    %859 = vmatmul.bf16.gmra.mxu0 %v770
    %v860 = vpop.f32.mrf.mxu0
    %v861 = vadd.f32 0.0, %v860
    %v862 = vpop.f32.mrf.mxu0
    %v863 = vadd.f32 0.0, %v862
    %864 = vdwg.mxu0
    %865 = vmatpush.bf16.msra.mxu0 %v834
    %866 = vmatpush.bf16.msra.mxu0 %v832
    %867 = vmatpush.bf16.msra.mxu0 %v830
    %868 = vmatpush.bf16.msra.mxu0 %v828
    %869 = vmatpush.bf16.msra.mxu0 %v826
    %870 = vmatpush.bf16.msra.mxu0 %v824
    %871 = vmatpush.bf16.msra.mxu0 %v822
    %872 = vmatpush.bf16.msra.mxu0 %v820
    %873 = vmatmul.bf16.gmra.mxu0 %v770
    %v874 = vpop.f32.mrf.mxu0
    %v875 = vadd.f32 0.0, %v874
    %v876 = vpop.f32.mrf.mxu0
    %v877 = vadd.f32 0.0, %v876
    %878 = vdwg.mxu0
    %v879 = vadd.f32 %v419, %v861
    %v880 = vadd.f32 %v421, %v863
    %v881 = vperm.slane %v194, 0
    %v882 = vadd.f32 %v879, %v881
    %v883 = vadd.f32 %v880, %v881
    %v884 = vmax.f32 %v882, 0.0
    %v885 = vmax.f32 %v883, 0.0
    %v886 = vpack.c.bf16 %v885, %v884
    %v903 = vunpack.c.l.b16 %v160
    %v904 = vunpack.c.h.b16 %v160
    %v905 = vunpack.c.l.b16 %v161
    %v906 = vunpack.c.h.b16 %v161
    %v907 = vunpack.c.l.b16 %v162
    %v908 = vunpack.c.h.b16 %v162
    %v909 = vunpack.c.l.b16 %v163
    %v910 = vunpack.c.h.b16 %v163
    %v911 = vunpack.c.l.b16 %v164
    %v912 = vunpack.c.h.b16 %v164
    %v913 = vunpack.c.l.b16 %v165
    %v914 = vunpack.c.h.b16 %v165
    %v915 = vunpack.c.l.b16 %v166
    %v916 = vunpack.c.h.b16 %v166
    %v917 = vunpack.c.l.b16 %v167
    %v918 = vunpack.c.h.b16 %v167
    %v919 = vunpack.c.l.b16 %v168
    %v920 = vunpack.c.h.b16 %v168
    %v921 = vunpack.c.l.b16 %v169
    %v922 = vunpack.c.h.b16 %v169
    %v923 = vunpack.c.l.b16 %v170
    %v924 = vunpack.c.h.b16 %v170
    %v925 = vunpack.c.l.b16 %v171
    %v926 = vunpack.c.h.b16 %v171
    %v927 = vunpack.c.l.b16 %v172
    %v928 = vunpack.c.h.b16 %v172
    %v929 = vunpack.c.l.b16 %v173
    %v930 = vunpack.c.h.b16 %v173
    %v931 = vunpack.c.l.b16 %v174
    %v932 = vunpack.c.h.b16 %v174
    %v933 = vunpack.c.l.b16 %v175
    %v934 = vunpack.c.h.b16 %v175
    %v935 = vpack.c.b16 %v905, %v903
    %v936 = vpack.c.b16 %v906, %v904
    %v937 = vpack.c.b16 %v909, %v907
    %v938 = vpack.c.b16 %v910, %v908
    %v939 = vpack.c.b16 %v913, %v911
    %v940 = vpack.c.b16 %v914, %v912
    %v941 = vpack.c.b16 %v917, %v915
    %v942 = vpack.c.b16 %v918, %v916
    %v943 = vpack.c.b16 %v921, %v919
    %v944 = vpack.c.b16 %v922, %v920
    %v945 = vpack.c.b16 %v925, %v923
    %v946 = vpack.c.b16 %v926, %v924
    %v947 = vpack.c.b16 %v929, %v927
    %v948 = vpack.c.b16 %v930, %v928
    %v949 = vpack.c.b16 %v933, %v931
    %v950 = vpack.c.b16 %v934, %v932
    %967 = vmatpush.bf16.msra.mxu0 %v949
    %968 = vmatpush.bf16.msra.mxu0 %v947
    %969 = vmatpush.bf16.msra.mxu0 %v945
    %970 = vmatpush.bf16.msra.mxu0 %v943
    %971 = vmatpush.bf16.msra.mxu0 %v941
    %972 = vmatpush.bf16.msra.mxu0 %v939
    %973 = vmatpush.bf16.msra.mxu0 %v937
    %974 = vmatpush.bf16.msra.mxu0 %v935
    %975 = vmatmul.bf16.gmra.mxu0 %v886
    %v976 = vpop.f32.mrf.mxu0
    %v977 = vadd.f32 0.0, %v976
    %v978 = vpop.f32.mrf.mxu0
    %v979 = vadd.f32 0.0, %v978
    %980 = vdwg.mxu0
    %981 = vmatpush.bf16.msra.mxu0 %v950
    %982 = vmatpush.bf16.msra.mxu0 %v948
    %983 = vmatpush.bf16.msra.mxu0 %v946
    %984 = vmatpush.bf16.msra.mxu0 %v944
    %985 = vmatpush.bf16.msra.mxu0 %v942
    %986 = vmatpush.bf16.msra.mxu0 %v940
    %987 = vmatpush.bf16.msra.mxu0 %v938
    %988 = vmatpush.bf16.msra.mxu0 %v936
    %989 = vmatmul.bf16.gmra.mxu0 %v886
    %v990 = vpop.f32.mrf.mxu0
    %v991 = vadd.f32 0.0, %v990
    %v992 = vpop.f32.mrf.mxu0
    %v993 = vadd.f32 0.0, %v992
    %994 = vdwg.mxu0
    %v995 = vadd.f32 %v645, %v977
    %v996 = vadd.f32 %v647, %v979
    %v997 = vperm.slane %v195, 0
    %v998 = vadd.f32 %v995, %v997
    %v999 = vadd.f32 %v996, %v997
    %v1000 = vmax.f32 %v998, 0.0
    %v1001 = vmax.f32 %v999, 0.0
    %v1002 = vpack.c.bf16 %v1001, %v1000
    %v1019 = vunpack.c.l.b16 %v176
    %v1020 = vunpack.c.l.b16 %v177
    %v1021 = vunpack.c.l.b16 %v178
    %v1022 = vunpack.c.l.b16 %v179
    %v1023 = vunpack.c.l.b16 %v180
    %v1024 = vunpack.c.l.b16 %v181
    %v1025 = vunpack.c.l.b16 %v182
    %v1026 = vunpack.c.l.b16 %v183
    %v1027 = vunpack.c.l.b16 %v184
    %v1028 = vunpack.c.l.b16 %v185
    %v1029 = vunpack.c.l.b16 %v186
    %v1030 = vunpack.c.l.b16 %v187
    %v1031 = vunpack.c.l.b16 %v188
    %v1032 = vunpack.c.l.b16 %v189
    %v1033 = vunpack.c.l.b16 %v190
    %v1034 = vunpack.c.l.b16 %v191
    %v1035 = vpack.c.b16 %v1020, %v1019
    %v1036 = vpack.c.b16 %v1022, %v1021
    %v1037 = vpack.c.b16 %v1024, %v1023
    %v1038 = vpack.c.b16 %v1026, %v1025
    %v1039 = vpack.c.b16 %v1028, %v1027
    %v1040 = vpack.c.b16 %v1030, %v1029
    %v1041 = vpack.c.b16 %v1032, %v1031
    %v1042 = vpack.c.b16 %v1034, %v1033
    %1051 = vmatpush.bf16.msra.mxu0 %v1042
    %1052 = vmatpush.bf16.msra.mxu0 %v1041
    %1053 = vmatpush.bf16.msra.mxu0 %v1040
    %1054 = vmatpush.bf16.msra.mxu0 %v1039
    %1055 = vmatpush.bf16.msra.mxu0 %v1038
    %1056 = vmatpush.bf16.msra.mxu0 %v1037
    %1057 = vmatpush.bf16.msra.mxu0 %v1036
    %1058 = vmatpush.bf16.msra.mxu0 %v1035
    %1059 = vmatmul.bf16.gmra.mxu0 %v1002
    %v1060 = vpop.f32.mrf.mxu0
    %v1061 = vadd.f32 0.0, %v1060
    %v1062 = vpop.f32.mrf.mxu0
    %v1063 = vadd.f32 0.0, %v1062
    %1064 = vdwg.mxu0
    %v1065 = vadd.f32 %v759, %v875
    %v1066 = vadd.f32 %v761, %v877
    %v1067 = vadd.f32 %v1065, %v991
    %v1068 = vadd.f32 %v1066, %v993
    %v1069 = vadd.f32 %v1067, %v1061
    %v1070 = vadd.f32 %v1068, %v1063
    %v1071 = vperm.slane %v196, 0
    %v1072 = vadd.f32 %v1069, %v1071
    %v1073 = vadd.f32 %v1070, %v1071
    %v1074 = vpack.c.bf16 %v1072, %v1072
    %v1075 = vpack.c.bf16 %v1073, %v1073
    %1076 = vst [vmem:[#allocation8] sm:$0xf] %v1074
    %1077 = vst [vmem:[#allocation8 + $0x4] sm:$0xf] %v1075
    // Predicated region
    $region26: #{tpu_custom_call.1} parent=1 // pred_check
      _
    $region27: #{tpu_custom_call.1} parent=1 // pred_check_branch
      %1079 = sbr.rel (0) target = $region29
    $region28: #{tpu_custom_call.1} parent=1 // pred_region
      %1081 = vsyncadd [#allocation4], 0
      %s1082 = sshll.u32 [#allocation8], 4
      %s1083 = int_to_ptr.vmem [resolvable:$true] %s1082
      %s1084 = sshll.u32 %s3, 4
      %s1085 = int_to_ptr.hbm [resolvable:$true] %s1084
      %1090 = dma.vmem_to_hbm [thread:$0]  %s1083, 128, %s1085, [#allocation4], 64, 64, 4
    $region29: #{tpu_custom_call.1} parent=1 // pred_fallthru
      _
    // Predicated region
    $region30: #{tpu_custom_call.1} parent=1 // pred_check
      _
    $region31: #{tpu_custom_call.1} parent=1 // pred_check_branch
      %1092 = sbr.rel (0) target = $region33
    $region32: #{tpu_custom_call.1} parent=1 // pred_region
      %1094 = dma.done [#allocation4], 128
    $region33: #{tpu_custom_call.1} parent=1 // pred_fallthru
      _
    %1095 = vsyncpa [#allocation3], 1
    %1096 = vsyncpa [#allocation6], 1
    %1097 = vsyncpa [#allocation4], 1

</llo_original>
